<compile_context>
chip_gen: v5e
topology: v5e:2x2
jax: 0.10.0
libtpu: 0.0.40
codegen_flags: <defaults>
</compile_context>

<pallas_src>
import jax
import jax.numpy as jnp
from jax import lax
from jax.experimental import pallas as pl
from jax.experimental.pallas import tpu as pltpu


def _linear_kernel(x_ref, w_ref, b_ref, o_ref):
    # x_ref: (tb, Fe) VMEM   -- tb (possibly lane-packed) rows of features
    # w_ref: (K, Fe)  VMEM   -- row j = weights for packed-slot j (K == 1 when unpacked)
    # b_ref: (1,)     SMEM   -- scalar bias
    # o_ref: (1, K, tb) VMEM -- lane-dense (transposed) outputs for this tile
    #
    # Contract the feature axis of both operands on the MXU; the result is already in the
    # lane-dense (K, tb) layout we want to store (same "A @ B^T" pattern as attention).
    y = lax.dot_general(
        w_ref[...], x_ref[...],
        dimension_numbers=(((1,), (1,)), ((), ())),
        preferred_element_type=jnp.float32,
    )  # (K, tb)
    o_ref[...] = (y + b_ref[0]).astype(o_ref.dtype)[None, :, :]


def _choose_batch_tile(rows, lane_width):
    """Rows per tile: byte-driven (~4 MiB per pipeline buffer, >=1 MiB floor), multiple of
    8, shrunk toward ~8 grid steps so v7x's two TensorCores both get work."""
    lane_pad = max(128, ((lane_width + 127) // 128) * 128)   # VMEM lane padding
    row_bytes = lane_pad * 4                                  # f32
    tb_target = max(8, ((4 << 20) // row_bytes // 8) * 8)     # ~4 MiB per buffer
    tb_floor = max(8, ((1 << 20) // row_bytes // 8) * 8)      # never below ~1 MiB
    tb_8steps = max(8, ((-(-rows // 8)) + 7) // 8 * 8)        # tile giving ~8 grid steps
    tb = min(tb_target, max(tb_8steps, tb_floor))
    if tb >= rows:
        return rows   # single block; block_dim == full array dim is always a legal tiling
    return tb


def linear_reg_forward(x, weight, bias):
    """x: (B, F) f32; weight: (1, F) (PyTorch nn.Linear layout); bias: (1,). Returns (B,)."""
    B, F = x.shape
    weight = weight.reshape(1, F)

    # Lane packing for F << 128: fold k = 128//F logical rows into one 128-lane row
    # (free row-major reshape, no HBM rewrite) and expand the weight into a block-diagonal
    # (k, k*F) matrix so a single MXU contraction still yields one value per logical row.
    k = 1
    if F < 128 and 128 % F == 0 and B % (128 // F) == 0:
        k = 128 // F
    if k > 1:
        x_eff = x.reshape(B // k, k * F)
        w_eff = jnp.kron(jnp.eye(k, dtype=weight.dtype), weight)   # (k, k*F), tiny
    else:
        # TODO(synk): when F << 128 but 128 % F != 0 (or B % k != 0) we fall back to the
        # unpacked path, which wastes VMEM lanes (HBM traffic is still the true bytes).
        x_eff, w_eff = x, weight

    R, Fe = x_eff.shape
    K = w_eff.shape[0]
    tb = _choose_batch_tile(R, Fe)
    num_tiles = pl.cdiv(R, tb)   # final block may be partial; Pallas masks its DMA

    cost = pl.CostEstimate(
        flops=2 * B * F,
        transcendentals=0,
        bytes_accessed=B * F * 4 + K * Fe * 4 + num_tiles * K * tb * 4 + 4,
    )

    out = pl.pallas_call(
        _linear_kernel,
        out_shape=jax.ShapeDtypeStruct((num_tiles, K, tb), x.dtype),
        grid_spec=pltpu.PrefetchScalarGridSpec(
            num_scalar_prefetch=0,
            grid=(num_tiles,),
            in_specs=[
                pl.BlockSpec((tb, Fe), lambda i: (i, 0)),             # x: batch-tiled
                pl.BlockSpec((K, Fe), lambda i: (0, 0)),              # weights: resident
                pl.BlockSpec(memory_space=pltpu.MemorySpace.SMEM),    # bias: SMEM scalar
            ],
            out_specs=pl.BlockSpec((1, K, tb), lambda i: (i, 0, 0)),  # lane-dense slab
        ),
        compiler_params=pltpu.CompilerParams(
            dimension_semantics=("parallel",),   # v7x: batch tiles split across both TCs
        ),
        cost_estimate=cost,
    )(x_eff, w_eff, bias)

    # out[i, j, r] holds the result for logical row (i*tb + r)*k + j; restore row order and
    # drop the tail (>= B) coming from the partial final block, if any. Output is tiny
    # (B floats), so this transpose/reshape is negligible.
    y = jnp.transpose(out, (0, 2, 1)).reshape(-1)[:B]
    return y


if __name__ == "__main__":
    key = jax.random.PRNGKey(0)
    kx1, kx2, kx3, kw, kb = jax.random.split(key, 5)

    def check(x, w, b):
        y = jax.block_until_ready(linear_reg_forward(x, w, b))
        # Precision-robust reference (pure VPU-style f32 reduce). Tolerance covers the
        # possibility of bf16-pass MXU matmul under default f32 precision.
        y_ref = jnp.sum(x * w.reshape(1, -1), axis=-1) + b[0]
        assert y.shape == (x.shape[0],), (y.shape, x.shape)
        assert jnp.allclose(y, y_ref, atol=2e-2, rtol=2e-2), (y, y_ref)

    # PyTorch nn.Linear-style init bound = 1/sqrt(F)
    n_features = 4
    bound = 1.0 / (n_features ** 0.5)
    weight = jax.random.uniform(kw, (1, n_features), jnp.float32, -bound, bound)
    bias = jax.random.uniform(kb, (1,), jnp.float32, -bound, bound)

    # 1) lane-packed path (F=4 -> 32 logical rows per 128-lane row)
    x1 = jax.random.normal(kx1, (64, n_features), dtype=jnp.float32)
    check(x1, weight, bias)

    # 2) unpacked fallback path (B not divisible by 128 // F)
    x2 = jax.random.normal(kx2, (8, n_features), dtype=jnp.float32)
    check(x2, weight, bias)

    # 3) F >= 128, multiple tiles with a partial final block (no wrapper-side padding)
    F3 = 256
    b3 = 1.0 / (F3 ** 0.5)
    w3 = jax.random.uniform(kw, (1, F3), jnp.float32, -b3, b3)
    bias3 = jax.random.uniform(kb, (1,), jnp.float32, -b3, b3)
    x3 = jax.random.normal(kx3, (2056, F3), dtype=jnp.float32)
    check(x3, w3, bias3)

    print("KERNEL_OK")
</pallas_src>

<mosaic_0001>
module attributes {stable_mosaic.version = 11 : i64} {
  func.func @_linear_kernel(%arg0: i32, %arg1: memref<2x128xf32, #tpu.memory_space<vmem>>, %arg2: memref<32x128xf32, #tpu.memory_space<vmem>>, %arg3: memref<1xf32, #tpu.memory_space<smem>>, %arg4: memref<1x32x2xf32, #tpu.memory_space<vmem>>) attributes {dimension_semantics = [#tpu.dimension_semantics<parallel>], iteration_bounds = array<i64: 1>, scalar_prefetch = 0 : i64, scratch_operands = 0 : i64, tpu.core_type = #tpu.core_type<tc>, window_params = [{transform_indices = @transform_0, window_bounds = array<i64: 2, 128>}, {pipeline_mode = #tpu.pipeline_mode<synchronous>, transform_indices = @transform_1, window_bounds = array<i64: 32, 128>}, {transform_indices = @transform_2, window_bounds = array<i64: 1>}, {transform_indices = @transform_3, window_bounds = array<i64: 1, 32, 2>}]} {
    %c0 = arith.constant 0 : index
    %c0_0 = arith.constant 0 : index
    %0 = vector.load %arg2[%c0, %c0_0] : memref<32x128xf32, #tpu.memory_space<vmem>>, vector<32x128xf32>
    %c0_1 = arith.constant 0 : index
    %c0_2 = arith.constant 0 : index
    %1 = vector.load %arg1[%c0_1, %c0_2] : memref<2x128xf32, #tpu.memory_space<vmem>>, vector<2x128xf32>
    %cst = arith.constant dense<0.000000e+00> : vector<32x2xf32>
    %2 = tpu.matmul %0, %1, %cst {dimension_numbers = #tpu.dot_dimension_numbers<[1], [1], [0], [0], [0, 0, 1, 0], [], []>} : vector<32x128xf32>, vector<2x128xf32>, vector<32x2xf32> -> vector<32x2xf32>
    %c0_3 = arith.constant 0 : index
    %3 = memref.load %arg3[%c0_3] : memref<1xf32, #tpu.memory_space<smem>>
    %4 = vector.broadcast %3 : f32 to vector<32x2xf32>
    %5 = arith.addf %2, %4 : vector<32x2xf32>
    %6 = vector.shape_cast %5 : vector<32x2xf32> to vector<1x32x2xf32>
    %c0_4 = arith.constant 0 : index
    %c0_5 = arith.constant 0 : index
    %c0_6 = arith.constant 0 : index
    %7 = vector.load %arg4[%c0_4, %c0_5, %c0_6] : memref<1x32x2xf32, #tpu.memory_space<vmem>>, vector<1x32x2xf32>
    tpu.vector_store %arg4[%c0_4, %c0_5, %c0_6], %6 {strides = array<i32>} : memref<1x32x2xf32, #tpu.memory_space<vmem>>, vector<1x32x2xf32>,
    return
  }
  func.func @transform_0(%arg0: i32) -> (i32, i32) {
    %c0_i32 = arith.constant 0 : i32
    %c0_i32_0 = arith.constant 0 : i32
    return %arg0, %c0_i32 : i32, i32
  }
  func.func @transform_1(%arg0: i32) -> (i32, i32) {
    %c0_i32 = arith.constant 0 : i32
    %c0_i32_0 = arith.constant 0 : i32
    %c0_i32_1 = arith.constant 0 : i32
    return %c0_i32, %c0_i32_0 : i32, i32
  }
  func.func @transform_2(%arg0: i32) -> i32 {
    %c0_i32 = arith.constant 0 : i32
    %c0_i32_0 = arith.constant 0 : i32
    return %c0_i32 : i32
  }
  func.func @transform_3(%arg0: i32) -> (i32, i32, i32) {
    %c0_i32 = arith.constant 0 : i32
    %c0_i32_0 = arith.constant 0 : i32
    %c0_i32_1 = arith.constant 0 : i32
    return %arg0, %c0_i32, %c0_i32_0 : i32, i32, i32
  }
}

</mosaic_0001>

<llo_original>
// kernel: tpu_custom_call.1
$region0: #{tpu_custom_call.1}
  #allocation0 [shape = 'u32[]', space=smem, size = 0x4, offset = 0x4, fixed_abs, tag = 'smem constant byte address 0x4 - core index']
  #allocation1 [shape = 'u32[72,128]{1,0:T(1,128)}', space=vmem, size = 0x9000, scoped, tag = 'internal scratch']
  #allocation2 [shape = 'f32[1]{0:T(128)S(6)}', space=smem, size = 0x200, scoped, tag = 'scoped memory for tpu_custom_call.1']
  %s0 = inlined_call_operand.vmem [shape: f32[2,128], index: 0, kind: input, shape index: {}]
  %s1 = inlined_call_operand.hbm [shape: f32[32,128], index: 1, kind: input, shape index: {}]
  %s2 = inlined_call_operand.<no memory space> [shape: f32[1], index: 2, kind: input, shape index: {}]
  %s3 = inlined_call_operand.vmem [shape: f32[1,32,2], index: 3, kind: output, shape index: {}]
  %s4 = sld [smem:[#allocation0]]
  $region26: #{tpu_custom_call.1} parent=0
    _
  %s6 = ssub.s32 1, %s4
  %s7 = scalar_select 0, %s6, %s4
  %8 = sst [smem:[#allocation2]] %s2
  $region1: #{tpu_custom_call.1} parent=0
    #allocation3 [shape = 'u8[16384]{0}', space=vmem, size = 0x4000, scoped, tag = 'input window, operand 1, single buffered']
    #allocation4 [shape = 's32[1]{0}', space=sflag, size = 0x4, scoped, tag = 'scoped memory for tpu_custom_call.1']
    %9 = vsyncpa [#allocation4], 0
    // Predicated region
    $region2: #{tpu_custom_call.1} parent=1 // pred_check
      _
    $region3: #{tpu_custom_call.1} parent=1 // pred_check_branch
      %11 = sbr.rel (0) target = $region5
    $region4: #{tpu_custom_call.1} parent=1 // pred_region
      _
    $region5: #{tpu_custom_call.1} parent=1 // pred_fallthru
      _
    // Predicated region
    $region6: #{tpu_custom_call.1} parent=1 // pred_check
      _
    $region7: #{tpu_custom_call.1} parent=1 // pred_check_branch
      %13 = sbr.rel (0) target = $region9
    $region8: #{tpu_custom_call.1} parent=1 // pred_region
      %15 = vsyncadd [#allocation4], 0
      %s16 = sshll.u32 %s1, 4
      %s17 = int_to_ptr.hbm [resolvable:$true] %s16
      %s18 = sshll.u32 [#allocation3], 4
      %s19 = int_to_ptr.vmem [resolvable:$true] %s18
      %24 = dma.hbm_to_vmem [thread:$0]  %s17, 512, %s19, [#allocation4], 128, 128, 8
    $region9: #{tpu_custom_call.1} parent=1 // pred_fallthru
      _
    // Predicated region
    $region10: #{tpu_custom_call.1} parent=1 // pred_check
      _
    $region11: #{tpu_custom_call.1} parent=1 // pred_check_branch
      %26 = sbr.rel (0) target = $region13
    $region12: #{tpu_custom_call.1} parent=1 // pred_region
      _
    $region13: #{tpu_custom_call.1} parent=1 // pred_fallthru
      _
    // Predicated region
    $region14: #{tpu_custom_call.1} parent=1 // pred_check
      _
    $region15: #{tpu_custom_call.1} parent=1 // pred_check_branch
      %28 = sbr.rel (0) target = $region17
    $region16: #{tpu_custom_call.1} parent=1 // pred_region
      %30 = dma.done [#allocation4], 512
    $region17: #{tpu_custom_call.1} parent=1 // pred_fallthru
      _
    %v31 = vld [vmem:[#allocation3] sm:$0xff]
    %v32 = vld [vmem:[#allocation3 + $0x8] sm:$0xff]
    %v33 = vld [vmem:[#allocation3 + $0x10] sm:$0xff]
    %v34 = vld [vmem:[#allocation3 + $0x18] sm:$0xff]
    %v35 = vld [vmem:[%s0] sm:$0x3]
    %s36 = sld [smem:[#allocation2]]
    %v37 = vstv %s36
    %38 = vmatpush.xpose.msra.mxu0 0.0
    %39 = vmatpush.xpose.msra.mxu0 0.0
    %40 = vmatpush.xpose.msra.mxu0 0.0
    %41 = vmatpush.xpose.msra.mxu0 0.0
    %42 = vmatpush.xpose.msra.mxu0 0.0
    %43 = vmatpush.xpose.msra.mxu0 0.0
    %44 = vmatpush.xpose.msra.mxu0 0.0
    %45 = vmatpush.xpose.msra.mxu0 0.0
    %46 = vmatpush.xpose.msra.mxu0 0.0
    %47 = vmatpush.xpose.msra.mxu0 0.0
    %48 = vmatpush.xpose.msra.mxu0 0.0
    %49 = vmatpush.xpose.msra.mxu0 0.0
    %50 = vmatpush.xpose.msra.mxu0 0.0
    %51 = vmatpush.xpose.msra.mxu0 0.0
    %52 = vmatpush.xpose.msra.mxu0 0.0
    %53 = vmatpush.xpose.msra.mxu0 %v35
    %54 = vmatmul.f32.gmra.mxu0 %v31
    %v55 = vpop.f32.mrf.mxu0
    %v56 = vadd.f32 %v37, %v55
    %57 = vmatmul.f32.gmra.mxu0 %v32
    %v58 = vpop.f32.mrf.mxu0
    %v59 = vadd.f32 %v37, %v58
    %60 = vmatmul.f32.gmra.mxu0 %v33
    %v61 = vpop.f32.mrf.mxu0
    %v62 = vadd.f32 %v37, %v61
    %63 = vmatmul.f32.gmra.mxu0 %v34
    %v64 = vpop.f32.mrf.mxu0
    %v65 = vadd.f32 %v37, %v64
    %66 = vdwg.mxu0
    %vm67 = vcmask 15360
    %68 = vst.msk [vmem:[%s3] sm:$0xff] %vm67, %v56
    %69 = vst.msk [vmem:[%s3 + $0x8] sm:$0xff] %vm67, %v59
    %70 = vst.msk [vmem:[%s3 + $0x10] sm:$0xff] %vm67, %v62
    %71 = vst.msk [vmem:[%s3 + $0x18] sm:$0xff] %vm67, %v65
    // Predicated region
    $region18: #{tpu_custom_call.1} parent=1 // pred_check
      _
    $region19: #{tpu_custom_call.1} parent=1 // pred_check_branch
      %73 = sbr.rel (0) target = $region21
    $region20: #{tpu_custom_call.1} parent=1 // pred_region
      _
    $region21: #{tpu_custom_call.1} parent=1 // pred_fallthru
      _
    // Predicated region
    $region22: #{tpu_custom_call.1} parent=1 // pred_check
      _
    $region23: #{tpu_custom_call.1} parent=1 // pred_check_branch
      %75 = sbr.rel (0) target = $region25
    $region24: #{tpu_custom_call.1} parent=1 // pred_region
      _
    $region25: #{tpu_custom_call.1} parent=1 // pred_fallthru
      _
    %76 = vsyncpa [#allocation4], 1

</llo_original>
